<compile_context>
chip_gen: v5e
topology: v5e:2x2
jax: 0.10.0
libtpu: 0.0.40
codegen_flags: <defaults>
</compile_context>

<pallas_src>
import functools

import jax
import jax.numpy as jnp
from jax import lax
from jax.experimental import pallas as pl
from jax.experimental.pallas import tpu as pltpu


def _infonce_kernel(*refs, inv_tau, num_valid_m, has_comb, mask_tail):
    if has_comb:
        (h1_ref, h2_ref, pos_ref, comb_ref,
         s_out_ref, lse_out_ref, m_ref, d_ref, s_ref) = refs
    else:
        (h1_ref, h2_ref, pos_ref,
         s_out_ref, lse_out_ref, m_ref, d_ref, s_ref) = refs
        comb_ref = None

    m_idx = pl.program_id(1)

    @pl.when(m_idx == 0)
    def _init():
        m_ref[...] = jnp.full_like(m_ref, -jnp.inf)
        d_ref[...] = jnp.zeros_like(d_ref)
        s_ref[...] = jnp.zeros_like(s_ref)

    # sim = (h1 @ h2.T) / tau — contract last dims of both (no transpose);
    # bf16 operands, f32 accumulation on the MXU, 1/tau applied in f32.
    sim = lax.dot_general(h1_ref[...], h2_ref[...], (((1,), (1,)), ((), ())),
                          preferred_element_type=jnp.float32)   # (TN, TM) f32
    sim = sim * jnp.float32(inv_tau)

    pos = pos_ref[...].astype(jnp.float32)

    # Online (flash-style) masked log-sum-exp across the M tiles; the max
    # subtraction cancels exactly in log_prob, so semantics are unchanged
    # while small tau cannot overflow exp().
    m_prev = m_ref[...]
    m_new = jnp.maximum(m_prev, jnp.max(sim, axis=1, keepdims=True))
    e = jnp.exp(sim - m_new)
    if has_comb:
        e = e * comb_ref[...].astype(jnp.float32)
    elif mask_tail:
        # comb == 1 for every real column; only zero the padded tail columns.
        tm = sim.shape[1]
        col = m_idx * tm + lax.broadcasted_iota(jnp.int32, sim.shape, 1)
        e = jnp.where(col < num_valid_m, e, 0.0)
    d_ref[...] = (d_ref[...] * jnp.exp(m_prev - m_new)
                  + jnp.sum(e, axis=1, keepdims=True))
    s_ref[...] += jnp.sum(pos * sim, axis=1, keepdims=True)
    m_ref[...] = m_new

    @pl.when(m_idx == pl.num_programs(1) - 1)
    def _finalize():
        # Lane-dense (TN, 128) blocks -> unmasked stores.  The division by
        # sum_j(pos) and the final mean happen in the wrapper.
        s_out_ref[...] = jnp.broadcast_to(s_ref[...], s_out_ref.shape)
        lse_out_ref[...] = jnp.broadcast_to(
            m_ref[...] + jnp.log(d_ref[...]), lse_out_ref.shape)


def _round_up(x, m):
    return ((x + m - 1) // m) * m


def _vmem_bytes(tn, tm, d_pad, compute_bytes, mask_bytes, n_mask_streams,
                mask_bufs):
    dense = 2 * (tn + tm) * d_pad * compute_bytes        # h1/h2 double-buffered
    masks = mask_bufs * n_mask_streams * tn * tm * mask_bytes
    outs = 2 * 2 * tn * 128 * 4                          # s / lse output blocks
    scratch = 3 * tn * 4                                 # m, d, s accumulators
    temps = 4 * tn * tm * 4                              # sim, exp, upcast masks
    return dense + masks + outs + scratch + temps


def infonce_loss(anchor, sample, pos_mask, neg_mask, tau, *,
                 block_n=256, block_m=1024,
                 compute_dtype=jnp.bfloat16, mask_dtype=jnp.int8,
                 dense_negatives=None):
    """InfoNCE loss (negative mean of per-row masked log-softmax).

    Preconditions (same as the reference PyTorch module):
      * every row of pos_mask has at least one positive; rows with
        sum_j(pos)==0 produce NaN (documented, not guarded).
      * with the default mask_dtype=int8 the masks must be 0/1 indicators;
        pass mask_dtype=jnp.float32 for arbitrary float mask weights.
    """
    N, D = anchor.shape
    M, D2 = sample.shape
    assert D2 == D
    assert pos_mask.shape == (N, M) and neg_mask.shape == (N, M)
    f32 = jnp.float32

    # Fast path: pos + neg == 1 everywhere (standard InfoNCE) -> the combined
    # mask stream is identically 1 and is dropped from the kernel entirely.
    if dense_negatives is None:
        try:
            dense_negatives = bool(
                jnp.all(pos_mask.astype(f32) + neg_mask.astype(f32) == 1.0))
        except Exception:   # abstract tracers under jit: take the general path
            dense_negatives = False
    has_comb = not dense_negatives

    # ---- tile selection -------------------------------------------------
    tn = min(block_n, _round_up(N, 128))
    # v7x shards the "parallel" axis across its 2 TensorCores: keep >= 2 N
    # tiles whenever the problem allows it (neutral on single-TC v5e/v6e).
    while tn > 128 and _round_up(N, tn) // tn < 2:
        tn //= 2
    tm = min(block_m, _round_up(M, 128))

    compute_bytes = jnp.dtype(compute_dtype).itemsize
    mask_bytes = jnp.dtype(mask_dtype).itemsize
    n_mask_streams = 2 if has_comb else 1
    d_pad = _round_up(D, 128)

    # Fit tiles into a <= 48 MiB VMEM budget (v7x has only 64 MiB physical per
    # TC; leave headroom for compiler scratch), counting the f32 temporaries.
    vmem_cap = 48 * 2**20
    while (tm > 128 and _vmem_bytes(tn, tm, d_pad, compute_bytes, mask_bytes,
                                    n_mask_streams, 2) > vmem_cap):
        tm //= 2
    while (tn > 128 and _vmem_bytes(tn, tm, d_pad, compute_bytes, mask_bytes,
                                    n_mask_streams, 2) > vmem_cap):
        tn //= 2

    n_pad = _round_up(N, tn)
    m_pad = _round_up(M, tm)
    grid = (n_pad // tn, m_pad // tm)

    # Triple-buffer the mask stream (largest per-step DMA) only when there are
    # enough reduction steps to hide it and VMEM headroom remains.
    use_buf3 = (grid[1] >= 3 and
                _vmem_bytes(tn, tm, d_pad, compute_bytes, mask_bytes,
                            n_mask_streams, 3) <= 40 * 2**20)

    def _mask_spec():
        if use_buf3:
            return pl.BlockSpec((tn, tm), lambda i, m: (i, m),
                                pipeline_mode=pl.Buffered(3))
        return pl.BlockSpec((tn, tm), lambda i, m: (i, m))

    usage = _vmem_bytes(tn, tm, d_pad, compute_bytes, mask_bytes,
                        n_mask_streams, 3 if use_buf3 else 2)
    vmem_limit = int(min(vmem_cap, max(32 * 2**20, int(1.5 * usage))))

    # ---- operand prep (one-shot XLA work, outside the kernel) ------------
    def _normalize(x):                     # F.normalize with eps = 1e-12
        x = x.astype(f32)
        nrm = jnp.sqrt(jnp.sum(x * x, axis=1, keepdims=True))
        return x / jnp.maximum(nrm, 1e-12)

    h1 = jnp.zeros((n_pad, d_pad), compute_dtype).at[:N, :D].set(
        _normalize(anchor).astype(compute_dtype))
    h2 = jnp.zeros((m_pad, d_pad), compute_dtype).at[:M, :D].set(
        _normalize(sample).astype(compute_dtype))
    pos = jnp.zeros((n_pad, m_pad), mask_dtype).at[:N, :M].set(
        pos_mask.astype(mask_dtype))

    inputs = [h1, h2, pos]
    in_specs = [
        pl.BlockSpec((tn, d_pad), lambda i, m: (i, 0)),    # h1 tile
        pl.BlockSpec((tm, d_pad), lambda i, m: (m, 0)),    # h2 tile
        _mask_spec(),                                       # pos mask stream
    ]
    if has_comb:
        comb = jnp.zeros((n_pad, m_pad), mask_dtype).at[:N, :M].set(
            (pos_mask.astype(f32) + neg_mask.astype(f32)).astype(mask_dtype))
        inputs.append(comb)
        in_specs.append(_mask_spec())                       # pos + neg stream

    kernel = functools.partial(
        _infonce_kernel, inv_tau=1.0 / float(tau), num_valid_m=M,
        has_comb=has_comb, mask_tail=(m_pad != M))

    s_out, lse_out = pl.pallas_call(
        kernel,
        out_shape=(jax.ShapeDtypeStruct((n_pad, 128), f32),
                   jax.ShapeDtypeStruct((n_pad, 128), f32)),
        grid_spec=pltpu.PrefetchScalarGridSpec(
            num_scalar_prefetch=0,
            grid=grid,
            in_specs=in_specs,
            out_specs=[pl.BlockSpec((tn, 128), lambda i, m: (i, 0)),
                       pl.BlockSpec((tn, 128), lambda i, m: (i, 0))],
            scratch_shapes=[
                pltpu.VMEM((tn, 1), f32),   # running row max
                pltpu.VMEM((tn, 1), f32),   # masked softmax denominator
                pltpu.VMEM((tn, 1), f32),   # sum_j pos * sim
            ],
        ),
        compiler_params=pltpu.CompilerParams(
            dimension_semantics=("parallel", "arbitrary"),
            vmem_limit_bytes=vmem_limit,
        ),
    )(*inputs)

    row_pos = jnp.sum(pos_mask.astype(f32), axis=1)     # one-shot XLA reduce
    per_row = s_out[:N, 0] / row_pos - lse_out[:N, 0]   # padded rows dropped
    return -jnp.mean(per_row)


def infonce_ref(anchor, sample, pos_mask, neg_mask, tau):
    # Pure-JAX reference mirroring the PyTorch module.
    def norm(x):
        return x / jnp.maximum(
            jnp.sqrt(jnp.sum(x * x, axis=1, keepdims=True)), 1e-12)
    sim = norm(anchor) @ norm(sample).T / tau
    exp_sim = jnp.exp(sim) * (pos_mask + neg_mask)
    log_prob = sim - jnp.log(jnp.sum(exp_sim, axis=1, keepdims=True))
    loss = jnp.sum(log_prob * pos_mask, axis=1) / jnp.sum(pos_mask, axis=1)
    return -jnp.mean(loss)


if __name__ == "__main__":
    key = jax.random.PRNGKey(0)
    k1, k2, k3 = jax.random.split(key, 3)

    N, M, D = 16, 16, 32
    tau = 0.5

    anchor = jax.random.normal(k1, (N, D), dtype=jnp.float32)
    sample = jax.random.normal(k2, (M, D), dtype=jnp.float32)

    # Positive mask: identity; negatives: everything else (pos + neg == 1).
    pos_mask = jnp.eye(N, M, dtype=jnp.float32)
    neg_mask = 1.0 - pos_mask

    ref = infonce_ref(anchor, sample, pos_mask, neg_mask, tau)

    # 1) Default config: bf16 MXU operands + comb==1 fast path (auto-detected).
    loss_fast = infonce_loss(anchor, sample, pos_mask, neg_mask, tau)
    jax.block_until_ready(loss_fast)
    assert jnp.allclose(loss_fast, ref, atol=3e-2, rtol=3e-2), (loss_fast, ref)

    # 2) Exactness check: f32 compute, generic combined-mask path forced.
    loss_f32 = infonce_loss(anchor, sample, pos_mask, neg_mask, tau,
                            compute_dtype=jnp.float32, mask_dtype=jnp.float32,
                            dense_negatives=False)
    jax.block_until_ready(loss_f32)
    assert jnp.allclose(loss_f32, ref, atol=1e-5, rtol=1e-5), (loss_f32, ref)

    # 3) Generic masks (pos + neg != 1 everywhere): int8 mask streams.
    neg2 = (jax.random.bernoulli(k3, 0.7, (N, M)) & (pos_mask == 0)
            ).astype(jnp.float32)
    ref2 = infonce_ref(anchor, sample, pos_mask, neg2, tau)
    loss2 = infonce_loss(anchor, sample, pos_mask, neg2, tau,
                         compute_dtype=jnp.float32)
    jax.block_until_ready(loss2)
    assert jnp.allclose(loss2, ref2, atol=1e-5, rtol=1e-5), (loss2, ref2)

    print("KERNEL_OK")
</pallas_src>

<mosaic_0001>
module attributes {stable_mosaic.version = 11 : i64} {
  func.func @_infonce_kernel(%arg0: i32, %arg1: i32, %arg2: memref<128x128xbf16, #tpu.memory_space<vmem>>, %arg3: memref<128x128xbf16, #tpu.memory_space<vmem>>, %arg4: memref<128x128xi8, #tpu.memory_space<vmem>>, %arg5: memref<128x128xf32, #tpu.memory_space<vmem>>, %arg6: memref<128x128xf32, #tpu.memory_space<vmem>>, %arg7: memref<128x1xf32, #tpu.memory_space<vmem>>, %arg8: memref<128x1xf32, #tpu.memory_space<vmem>>, %arg9: memref<128x1xf32, #tpu.memory_space<vmem>>) attributes {dimension_semantics = [#tpu.dimension_semantics<parallel>, #tpu.dimension_semantics<arbitrary>], iteration_bounds = array<i64: 1, 1>, scalar_prefetch = 0 : i64, scratch_operands = 3 : i64, tpu.core_type = #tpu.core_type<tc>, window_params = [{transform_indices = @transform_0, window_bounds = array<i64: 128, 128>}, {transform_indices = @transform_1, window_bounds = array<i64: 128, 128>}, {transform_indices = @transform_2, window_bounds = array<i64: 128, 128>}, {transform_indices = @transform_3, window_bounds = array<i64: 128, 128>}, {transform_indices = @transform_4, window_bounds = array<i64: 128, 128>}]} {
    %c0_i32 = arith.constant 0 : i32
    %0 = arith.cmpi eq, %arg1, %c0_i32 : i32
    %1 = arith.extui %0 : i1 to i32
    %c0_i32_0 = arith.constant 0 : i32
    %2 = arith.cmpi ne, %1, %c0_i32_0 : i32
    scf.if %2 {
      %cst_25 = arith.constant 0xFF800000 : f32
      %43 = vector.broadcast %cst_25 : f32 to vector<128x1xf32>
      %c0_26 = arith.constant 0 : index
      %c0_27 = arith.constant 0 : index
      %44 = vector.load %arg7[%c0_26, %c0_27] : memref<128x1xf32, #tpu.memory_space<vmem>>, vector<128x1xf32>
      tpu.vector_store %arg7[%c0_26, %c0_27], %43 {strides = array<i32>} : memref<128x1xf32, #tpu.memory_space<vmem>>, vector<128x1xf32>,
      %cst_28 = arith.constant 0.000000e+00 : f32
      %45 = vector.broadcast %cst_28 : f32 to vector<128x1xf32>
      %c0_29 = arith.constant 0 : index
      %c0_30 = arith.constant 0 : index
      %46 = vector.load %arg8[%c0_29, %c0_30] : memref<128x1xf32, #tpu.memory_space<vmem>>, vector<128x1xf32>
      tpu.vector_store %arg8[%c0_29, %c0_30], %45 {strides = array<i32>} : memref<128x1xf32, #tpu.memory_space<vmem>>, vector<128x1xf32>,
      %cst_31 = arith.constant 0.000000e+00 : f32
      %47 = vector.broadcast %cst_31 : f32 to vector<128x1xf32>
      %c0_32 = arith.constant 0 : index
      %c0_33 = arith.constant 0 : index
      %48 = vector.load %arg9[%c0_32, %c0_33] : memref<128x1xf32, #tpu.memory_space<vmem>>, vector<128x1xf32>
      tpu.vector_store %arg9[%c0_32, %c0_33], %47 {strides = array<i32>} : memref<128x1xf32, #tpu.memory_space<vmem>>, vector<128x1xf32>,
    } else {
    }
    %c0 = arith.constant 0 : index
    %c0_1 = arith.constant 0 : index
    %3 = vector.load %arg2[%c0, %c0_1] : memref<128x128xbf16, #tpu.memory_space<vmem>>, vector<128x128xbf16>
    %c0_2 = arith.constant 0 : index
    %c0_3 = arith.constant 0 : index
    %4 = vector.load %arg3[%c0_2, %c0_3] : memref<128x128xbf16, #tpu.memory_space<vmem>>, vector<128x128xbf16>
    %cst = arith.constant dense<0.000000e+00> : vector<128x128xf32>
    %5 = tpu.matmul %3, %4, %cst {dimension_numbers = #tpu.dot_dimension_numbers<[1], [1], [0], [0], [0, 0, 1, 0], [], []>} : vector<128x128xbf16>, vector<128x128xbf16>, vector<128x128xf32> -> vector<128x128xf32>
    %cst_4 = arith.constant 2.000000e+00 : f32
    %6 = vector.broadcast %cst_4 : f32 to vector<128x128xf32>
    %7 = arith.mulf %5, %6 : vector<128x128xf32>
    %c0_5 = arith.constant 0 : index
    %c0_6 = arith.constant 0 : index
    %8 = vector.load %arg4[%c0_5, %c0_6] : memref<128x128xi8, #tpu.memory_space<vmem>>, vector<128x128xi8>
    %9 = arith.sitofp %8 : vector<128x128xi8> to vector<128x128xf32>
    %c0_7 = arith.constant 0 : index
    %c0_8 = arith.constant 0 : index
    %10 = vector.load %arg7[%c0_7, %c0_8] : memref<128x1xf32, #tpu.memory_space<vmem>>, vector<128x1xf32>
    %cst_9 = arith.constant dense<0xFF800000> : vector<128xf32>
    %11 = vector.multi_reduction <maximumf>, %7, %cst_9 [1] : vector<128x128xf32> to vector<128xf32>
    %12 = vector.shape_cast %11 : vector<128xf32> to vector<128x1xf32>
    %13 = arith.maximumf %10, %12 : vector<128x1xf32>
    %14 = vector.broadcast %13 : vector<128x1xf32> to vector<128x128xf32>
    %15 = arith.subf %7, %14 : vector<128x128xf32>
    %16 = math.exp %15 : vector<128x128xf32>
    %c128_i32 = arith.constant 128 : i32
    %17 = arith.muli %arg1, %c128_i32 : i32
    %18 = tpu.iota {dimensions = array<i32: 1>} : vector<128x128xi32>
    %19 = vector.broadcast %17 : i32 to vector<128x128xi32>
    %20 = arith.addi %19, %18 : vector<128x128xi32>
    %c16_i32 = arith.constant 16 : i32
    %21 = vector.broadcast %c16_i32 : i32 to vector<128x128xi32>
    %22 = arith.cmpi slt, %20, %21 : vector<128x128xi32>
    %cst_10 = arith.constant 0.000000e+00 : f32
    %23 = vector.broadcast %cst_10 : f32 to vector<128x128xf32>
    %24 = arith.select %22, %16, %23 : vector<128x128xi1>, vector<128x128xf32>
    %c0_11 = arith.constant 0 : index
    %c0_12 = arith.constant 0 : index
    %25 = vector.load %arg8[%c0_11, %c0_12] : memref<128x1xf32, #tpu.memory_space<vmem>>, vector<128x1xf32>
    %26 = arith.subf %10, %13 : vector<128x1xf32>
    %27 = math.exp %26 : vector<128x1xf32>
    %28 = arith.mulf %25, %27 : vector<128x1xf32>
    %cst_13 = arith.constant dense<0.000000e+00> : vector<128xf32>
    %29 = vector.multi_reduction <add>, %24, %cst_13 [1] : vector<128x128xf32> to vector<128xf32>
    %30 = vector.shape_cast %29 : vector<128xf32> to vector<128x1xf32>
    %31 = arith.addf %28, %30 : vector<128x1xf32>
    %c0_14 = arith.constant 0 : index
    %c0_15 = arith.constant 0 : index
    %32 = vector.load %arg8[%c0_14, %c0_15] : memref<128x1xf32, #tpu.memory_space<vmem>>, vector<128x1xf32>
    tpu.vector_store %arg8[%c0_14, %c0_15], %31 {strides = array<i32>} : memref<128x1xf32, #tpu.memory_space<vmem>>, vector<128x1xf32>,
    %c0_16 = arith.constant 0 : index
    %c0_17 = arith.constant 0 : index
    %33 = vector.load %arg9[%c0_16, %c0_17] : memref<128x1xf32, #tpu.memory_space<vmem>>, vector<128x1xf32>
    %34 = arith.mulf %9, %7 : vector<128x128xf32>
    %cst_18 = arith.constant dense<0.000000e+00> : vector<128xf32>
    %35 = vector.multi_reduction <add>, %34, %cst_18 [1] : vector<128x128xf32> to vector<128xf32>
    %36 = vector.shape_cast %35 : vector<128xf32> to vector<128x1xf32>
    %37 = arith.addf %33, %36 : vector<128x1xf32>
    %c0_19 = arith.constant 0 : index
    %c0_20 = arith.constant 0 : index
    %38 = vector.load %arg9[%c0_19, %c0_20] : memref<128x1xf32, #tpu.memory_space<vmem>>, vector<128x1xf32>
    tpu.vector_store %arg9[%c0_19, %c0_20], %37 {strides = array<i32>} : memref<128x1xf32, #tpu.memory_space<vmem>>, vector<128x1xf32>,
    %c0_21 = arith.constant 0 : index
    %c0_22 = arith.constant 0 : index
    %39 = vector.load %arg7[%c0_21, %c0_22] : memref<128x1xf32, #tpu.memory_space<vmem>>, vector<128x1xf32>
    tpu.vector_store %arg7[%c0_21, %c0_22], %13 {strides = array<i32>} : memref<128x1xf32, #tpu.memory_space<vmem>>, vector<128x1xf32>,
    %c0_i32_23 = arith.constant 0 : i32
    %40 = arith.cmpi eq, %arg1, %c0_i32_23 : i32
    %41 = arith.extui %40 : i1 to i32
    %c0_i32_24 = arith.constant 0 : i32
    %42 = arith.cmpi ne, %41, %c0_i32_24 : i32
    scf.if %42 {
      %c0_25 = arith.constant 0 : index
      %c0_26 = arith.constant 0 : index
      %43 = vector.load %arg9[%c0_25, %c0_26] : memref<128x1xf32, #tpu.memory_space<vmem>>, vector<128x1xf32>
      %44 = vector.shape_cast %43 : vector<128x1xf32> to vector<128x1xf32>
      %45 = vector.broadcast %44 : vector<128x1xf32> to vector<128x128xf32>
      %c0_27 = arith.constant 0 : index
      %c0_28 = arith.constant 0 : index
      %46 = vector.load %arg5[%c0_27, %c0_28] : memref<128x128xf32, #tpu.memory_space<vmem>>, vector<128x128xf32>
      tpu.vector_store %arg5[%c0_27, %c0_28], %45 {strides = array<i32>} : memref<128x128xf32, #tpu.memory_space<vmem>>, vector<128x128xf32>,
      %c0_29 = arith.constant 0 : index
      %c0_30 = arith.constant 0 : index
      %47 = vector.load %arg7[%c0_29, %c0_30] : memref<128x1xf32, #tpu.memory_space<vmem>>, vector<128x1xf32>
      %c0_31 = arith.constant 0 : index
      %c0_32 = arith.constant 0 : index
      %48 = vector.load %arg8[%c0_31, %c0_32] : memref<128x1xf32, #tpu.memory_space<vmem>>, vector<128x1xf32>
      %49 = math.log %48 : vector<128x1xf32>
      %50 = arith.addf %47, %49 : vector<128x1xf32>
      %51 = vector.shape_cast %50 : vector<128x1xf32> to vector<128x1xf32>
      %52 = vector.broadcast %51 : vector<128x1xf32> to vector<128x128xf32>
      %c0_33 = arith.constant 0 : index
      %c0_34 = arith.constant 0 : index
      %53 = vector.load %arg6[%c0_33, %c0_34] : memref<128x128xf32, #tpu.memory_space<vmem>>, vector<128x128xf32>
      tpu.vector_store %arg6[%c0_33, %c0_34], %52 {strides = array<i32>} : memref<128x128xf32, #tpu.memory_space<vmem>>, vector<128x128xf32>,
    } else {
    }
    return
  }
  func.func @transform_0(%arg0: i32, %arg1: i32) -> (i32, i32) {
    %c0_i32 = arith.constant 0 : i32
    %c0_i32_0 = arith.constant 0 : i32
    return %arg0, %c0_i32 : i32, i32
  }
  func.func @transform_1(%arg0: i32, %arg1: i32) -> (i32, i32) {
    %c0_i32 = arith.constant 0 : i32
    %c0_i32_0 = arith.constant 0 : i32
    return %arg1, %c0_i32 : i32, i32
  }
  func.func @transform_2(%arg0: i32, %arg1: i32) -> (i32, i32) {
    %c0_i32 = arith.constant 0 : i32
    return %arg0, %arg1 : i32, i32
  }
  func.func @transform_3(%arg0: i32, %arg1: i32) -> (i32, i32) {
    %c0_i32 = arith.constant 0 : i32
    %c0_i32_0 = arith.constant 0 : i32
    return %arg0, %c0_i32 : i32, i32
  }
  func.func @transform_4(%arg0: i32, %arg1: i32) -> (i32, i32) {
    %c0_i32 = arith.constant 0 : i32
    %c0_i32_0 = arith.constant 0 : i32
    return %arg0, %c0_i32 : i32, i32
  }
}

</mosaic_0001>

<llo_original>
// kernel: tpu_custom_call.1
$region0: #{tpu_custom_call.1}
  #allocation0 [shape = 'u32[]', space=smem, size = 0x4, offset = 0x4, fixed_abs, tag = 'smem constant byte address 0x4 - core index']
  #allocation1 [shape = 'u32[72,128]{1,0:T(1,128)}', space=vmem, size = 0x9000, scoped, tag = 'internal scratch']
  #allocation2 [shape = 'f32[128,1]{1,0:T(8,128)}', space=vmem, size = 0x10000, scoped, tag = 'scratch operand']
  #allocation3 [shape = 'f32[128,1]{1,0:T(8,128)}', space=vmem, size = 0x10000, scoped, tag = 'scratch operand']
  #allocation4 [shape = 'f32[128,1]{1,0:T(8,128)}', space=vmem, size = 0x10000, scoped, tag = 'scratch operand']
  %s0 = inlined_call_operand.hbm [shape: bf16[128,128], index: 0, kind: input, shape index: {}]
  %s1 = inlined_call_operand.hbm [shape: bf16[128,128], index: 1, kind: input, shape index: {}]
  %s2 = inlined_call_operand.hbm [shape: s8[128,128], index: 2, kind: input, shape index: {}]
  %s3 = inlined_call_operand.hbm [shape: f32[128,128], index: 3, kind: output, shape index: {0}]
  %s4 = inlined_call_operand.hbm [shape: f32[128,128], index: 4, kind: output, shape index: {1}]
  %5 = xla_tuple %s3, %s4
  %s6 = sld [smem:[#allocation0]]
  $region50: #{tpu_custom_call.1} parent=0
    _
  %s8 = ssub.s32 1, %s6
  %s9 = scalar_select 0, %s8, %s6
  $region1: #{tpu_custom_call.1} parent=0
    #allocation5 [shape = 'u8[32768]{0}', space=vmem, size = 0x8000, scoped, tag = 'input window, operand 0, single buffered']
    #allocation6 [shape = 's32[1]{0}', space=sflag, size = 0x4, scoped, tag = 'scoped memory for tpu_custom_call.1']
    #allocation7 [shape = 's32[1]{0}', space=sflag, size = 0x4, scoped, tag = 'scoped memory for tpu_custom_call.1']
    #allocation8 [shape = 'u8[32768]{0}', space=vmem, size = 0x8000, scoped, tag = 'input window, operand 1, single buffered']
    #allocation9 [shape = 's32[1]{0}', space=sflag, size = 0x4, scoped, tag = 'scoped memory for tpu_custom_call.1']
    #allocation10 [shape = 'u8[16384]{0}', space=vmem, size = 0x4000, scoped, tag = 'input window, operand 2, single buffered']
    #allocation11 [shape = 'u8[65536]{0}', space=vmem, size = 0x10000, scoped, tag = 'output window, operand 0, single buffered']
    #allocation12 [shape = 'u8[65536]{0}', space=vmem, size = 0x10000, scoped, tag = 'output window, operand 1, single buffered']
    #allocation13 [shape = 's32[1]{0}', space=sflag, size = 0x4, scoped, tag = 'scoped memory for tpu_custom_call.1']
    %10 = vsyncpa [#allocation6], 0
    %11 = vsyncpa [#allocation9], 0
    %12 = vsyncpa [#allocation7], 0
    %13 = vsyncpa [#allocation13], 0
    // Predicated region
    $region2: #{tpu_custom_call.1} parent=1 // pred_check
      _
    $region3: #{tpu_custom_call.1} parent=1 // pred_check_branch
      %15 = sbr.rel (0) target = $region5
    $region4: #{tpu_custom_call.1} parent=1 // pred_region
      %17 = vsyncadd [#allocation6], 0
      %s18 = sshll.u32 %s0, 4
      %s19 = int_to_ptr.hbm [resolvable:$true] %s18
      %s20 = sshll.u32 [#allocation5], 4
      %s21 = int_to_ptr.vmem [resolvable:$true] %s20
      %26 = dma.hbm_to_vmem [thread:$0]  %s19, 1024, %s21, [#allocation6], 64, 64, 4
    $region5: #{tpu_custom_call.1} parent=1 // pred_fallthru
      _
    // Predicated region
    $region6: #{tpu_custom_call.1} parent=1 // pred_check
      _
    $region7: #{tpu_custom_call.1} parent=1 // pred_check_branch
      %28 = sbr.rel (0) target = $region9
    $region8: #{tpu_custom_call.1} parent=1 // pred_region
      %30 = vsyncadd [#allocation9], 0
      %s31 = sshll.u32 %s1, 4
      %s32 = int_to_ptr.hbm [resolvable:$true] %s31
      %s33 = sshll.u32 [#allocation8], 4
      %s34 = int_to_ptr.vmem [resolvable:$true] %s33
      %39 = dma.hbm_to_vmem [thread:$0]  %s32, 1024, %s34, [#allocation9], 64, 64, 4
    $region9: #{tpu_custom_call.1} parent=1 // pred_fallthru
      _
    // Predicated region
    $region10: #{tpu_custom_call.1} parent=1 // pred_check
      _
    $region11: #{tpu_custom_call.1} parent=1 // pred_check_branch
      %41 = sbr.rel (0) target = $region13
    $region12: #{tpu_custom_call.1} parent=1 // pred_region
      %43 = vsyncadd [#allocation9], 0
      %s44 = sshll.u32 %s2, 4
      %s45 = int_to_ptr.hbm [resolvable:$true] %s44
      %s46 = sshll.u32 [#allocation10], 4
      %s47 = int_to_ptr.vmem [resolvable:$true] %s46
      %52 = dma.hbm_to_vmem [thread:$0]  %s45, 512, %s47, [#allocation9], 128, 128, 8
    $region13: #{tpu_custom_call.1} parent=1 // pred_fallthru
      _
    // Predicated region
    $region14: #{tpu_custom_call.1} parent=1 // pred_check
      _
    $region15: #{tpu_custom_call.1} parent=1 // pred_check_branch
      %54 = sbr.rel (0) target = $region17
    $region16: #{tpu_custom_call.1} parent=1 // pred_region
      %56 = dma.done [#allocation6], 1024
    $region17: #{tpu_custom_call.1} parent=1 // pred_fallthru
      _
    // Predicated region
    $region18: #{tpu_custom_call.1} parent=1 // pred_check
      _
    $region19: #{tpu_custom_call.1} parent=1 // pred_check_branch
      %58 = sbr.rel (0) target = $region21
    $region20: #{tpu_custom_call.1} parent=1 // pred_region
      %60 = dma.done [#allocation9], 1024
    $region21: #{tpu_custom_call.1} parent=1 // pred_fallthru
      _
    // Predicated region
    $region22: #{tpu_custom_call.1} parent=1 // pred_check
      _
    $region23: #{tpu_custom_call.1} parent=1 // pred_check_branch
      %62 = sbr.rel (0) target = $region25
    $region24: #{tpu_custom_call.1} parent=1 // pred_region
      %64 = dma.done [#allocation9], 512
    $region25: #{tpu_custom_call.1} parent=1 // pred_fallthru
      _
    %p65 = scmp.eq.s32.totalorder 0, 0
    // Predicated region
    $region26: #{tpu_custom_call.1} parent=1 // pred_check
      %p66 = pneg %p65
    $region27: #{tpu_custom_call.1} parent=1 // pred_check_branch
      %68 = sbr.rel (%p66) target = $region29
    $region28: #{tpu_custom_call.1} parent=1 // pred_region
      %vm69 = vcmask 7168
      %70 = vst.msk [vmem:[#allocation2] sm:$0xff] %vm69, -inf
      %71 = vst.msk [vmem:[#allocation2 + $0x8] sm:$0xff] %vm69, -inf
      %72 = vst.msk [vmem:[#allocation2 + $0x10] sm:$0xff] %vm69, -inf
      %73 = vst.msk [vmem:[#allocation2 + $0x18] sm:$0xff] %vm69, -inf
      %74 = vst.msk [vmem:[#allocation2 + $0x20] sm:$0xff] %vm69, -inf
      %75 = vst.msk [vmem:[#allocation2 + $0x28] sm:$0xff] %vm69, -inf
      %76 = vst.msk [vmem:[#allocation2 + $0x30] sm:$0xff] %vm69, -inf
      %77 = vst.msk [vmem:[#allocation2 + $0x38] sm:$0xff] %vm69, -inf
      %78 = vst.msk [vmem:[#allocation2 + $0x40] sm:$0xff] %vm69, -inf
      %79 = vst.msk [vmem:[#allocation2 + $0x48] sm:$0xff] %vm69, -inf
      %80 = vst.msk [vmem:[#allocation2 + $0x50] sm:$0xff] %vm69, -inf
      %81 = vst.msk [vmem:[#allocation2 + $0x58] sm:$0xff] %vm69, -inf
      %82 = vst.msk [vmem:[#allocation2 + $0x60] sm:$0xff] %vm69, -inf
      %83 = vst.msk [vmem:[#allocation2 + $0x68] sm:$0xff] %vm69, -inf
      %84 = vst.msk [vmem:[#allocation2 + $0x70] sm:$0xff] %vm69, -inf
      %85 = vst.msk [vmem:[#allocation2 + $0x78] sm:$0xff] %vm69, -inf
      %86 = vst.msk [vmem:[#allocation3] sm:$0xff] %vm69, 0.0
      %87 = vst.msk [vmem:[#allocation3 + $0x8] sm:$0xff] %vm69, 0.0
      %88 = vst.msk [vmem:[#allocation3 + $0x10] sm:$0xff] %vm69, 0.0
      %89 = vst.msk [vmem:[#allocation3 + $0x18] sm:$0xff] %vm69, 0.0
      %90 = vst.msk [vmem:[#allocation3 + $0x20] sm:$0xff] %vm69, 0.0
      %91 = vst.msk [vmem:[#allocation3 + $0x28] sm:$0xff] %vm69, 0.0
      %92 = vst.msk [vmem:[#allocation3 + $0x30] sm:$0xff] %vm69, 0.0
      %93 = vst.msk [vmem:[#allocation3 + $0x38] sm:$0xff] %vm69, 0.0
      %94 = vst.msk [vmem:[#allocation3 + $0x40] sm:$0xff] %vm69, 0.0
      %95 = vst.msk [vmem:[#allocation3 + $0x48] sm:$0xff] %vm69, 0.0
      %96 = vst.msk [vmem:[#allocation3 + $0x50] sm:$0xff] %vm69, 0.0
      %97 = vst.msk [vmem:[#allocation3 + $0x58] sm:$0xff] %vm69, 0.0
      %98 = vst.msk [vmem:[#allocation3 + $0x60] sm:$0xff] %vm69, 0.0
      %99 = vst.msk [vmem:[#allocation3 + $0x68] sm:$0xff] %vm69, 0.0
      %100 = vst.msk [vmem:[#allocation3 + $0x70] sm:$0xff] %vm69, 0.0
      %101 = vst.msk [vmem:[#allocation3 + $0x78] sm:$0xff] %vm69, 0.0
      %102 = vst.msk [vmem:[#allocation4] sm:$0xff] %vm69, 0.0
      %103 = vst.msk [vmem:[#allocation4 + $0x8] sm:$0xff] %vm69, 0.0
      %104 = vst.msk [vmem:[#allocation4 + $0x10] sm:$0xff] %vm69, 0.0
      %105 = vst.msk [vmem:[#allocation4 + $0x18] sm:$0xff] %vm69, 0.0
      %106 = vst.msk [vmem:[#allocation4 + $0x20] sm:$0xff] %vm69, 0.0
      %107 = vst.msk [vmem:[#allocation4 + $0x28] sm:$0xff] %vm69, 0.0
      %108 = vst.msk [vmem:[#allocation4 + $0x30] sm:$0xff] %vm69, 0.0
      %109 = vst.msk [vmem:[#allocation4 + $0x38] sm:$0xff] %vm69, 0.0
      %110 = vst.msk [vmem:[#allocation4 + $0x40] sm:$0xff] %vm69, 0.0
      %111 = vst.msk [vmem:[#allocation4 + $0x48] sm:$0xff] %vm69, 0.0
      %112 = vst.msk [vmem:[#allocation4 + $0x50] sm:$0xff] %vm69, 0.0
      %113 = vst.msk [vmem:[#allocation4 + $0x58] sm:$0xff] %vm69, 0.0
      %114 = vst.msk [vmem:[#allocation4 + $0x60] sm:$0xff] %vm69, 0.0
      %115 = vst.msk [vmem:[#allocation4 + $0x68] sm:$0xff] %vm69, 0.0
      %116 = vst.msk [vmem:[#allocation4 + $0x70] sm:$0xff] %vm69, 0.0
      %117 = vst.msk [vmem:[#allocation4 + $0x78] sm:$0xff] %vm69, 0.0
    $region29: #{tpu_custom_call.1} parent=1 // pred_fallthru
      _
    %v118 = vld [vmem:[#allocation5] sm:$0xf]
    %v119 = vld [vmem:[#allocation5 + $0x4] sm:$0xf]
    %v120 = vld [vmem:[#allocation5 + $0x8] sm:$0xf]
    %v121 = vld [vmem:[#allocation5 + $0xc] sm:$0xf]
    %v122 = vld [vmem:[#allocation5 + $0x10] sm:$0xf]
    %v123 = vld [vmem:[#allocation5 + $0x14] sm:$0xf]
    %v124 = vld [vmem:[#allocation5 + $0x18] sm:$0xf]
    %v125 = vld [vmem:[#allocation5 + $0x1c] sm:$0xf]
    %v126 = vld [vmem:[#allocation5 + $0x20] sm:$0xf]
    %v127 = vld [vmem:[#allocation5 + $0x24] sm:$0xf]
    %v128 = vld [vmem:[#allocation5 + $0x28] sm:$0xf]
    %v129 = vld [vmem:[#allocation5 + $0x2c] sm:$0xf]
    %v130 = vld [vmem:[#allocation5 + $0x30] sm:$0xf]
    %v131 = vld [vmem:[#allocation5 + $0x34] sm:$0xf]
    %v132 = vld [vmem:[#allocation5 + $0x38] sm:$0xf]
    %v133 = vld [vmem:[#allocation5 + $0x3c] sm:$0xf]
    %v134 = vld [vmem:[#allocation8] sm:$0xf]
    %v135 = vld [vmem:[#allocation8 + $0x4] sm:$0xf]
    %v136 = vld [vmem:[#allocation8 + $0x8] sm:$0xf]
    %v137 = vld [vmem:[#allocation8 + $0xc] sm:$0xf]
    %v138 = vld [vmem:[#allocation8 + $0x10] sm:$0xf]
    %v139 = vld [vmem:[#allocation8 + $0x14] sm:$0xf]
    %v140 = vld [vmem:[#allocation8 + $0x18] sm:$0xf]
    %v141 = vld [vmem:[#allocation8 + $0x1c] sm:$0xf]
    %v142 = vld [vmem:[#allocation8 + $0x20] sm:$0xf]
    %v143 = vld [vmem:[#allocation8 + $0x24] sm:$0xf]
    %v144 = vld [vmem:[#allocation8 + $0x28] sm:$0xf]
    %v145 = vld [vmem:[#allocation8 + $0x2c] sm:$0xf]
    %v146 = vld [vmem:[#allocation8 + $0x30] sm:$0xf]
    %v147 = vld [vmem:[#allocation8 + $0x34] sm:$0xf]
    %v148 = vld [vmem:[#allocation8 + $0x38] sm:$0xf]
    %v149 = vld [vmem:[#allocation8 + $0x3c] sm:$0xf]
    %v166 = vunpack.c.l.b16 %v118
    %v167 = vunpack.c.l.b16 %v119
    %v168 = vunpack.c.l.b16 %v120
    %v169 = vunpack.c.l.b16 %v121
    %v170 = vunpack.c.l.b16 %v122
    %v171 = vunpack.c.l.b16 %v123
    %v172 = vunpack.c.l.b16 %v124
    %v173 = vunpack.c.l.b16 %v125
    %v174 = vunpack.c.l.b16 %v126
    %v175 = vunpack.c.l.b16 %v127
    %v176 = vunpack.c.l.b16 %v128
    %v177 = vunpack.c.l.b16 %v129
    %v178 = vunpack.c.l.b16 %v130
    %v179 = vunpack.c.l.b16 %v131
    %v180 = vunpack.c.l.b16 %v132
    %v181 = vunpack.c.l.b16 %v133
    %v182 = vpack.c.b16 %v167, %v166
    %v183 = vpack.c.b16 %v169, %v168
    %v184 = vpack.c.b16 %v171, %v170
    %v185 = vpack.c.b16 %v173, %v172
    %v186 = vpack.c.b16 %v175, %v174
    %v187 = vpack.c.b16 %v177, %v176
    %v188 = vpack.c.b16 %v179, %v178
    %v189 = vpack.c.b16 %v181, %v180
    %v214 = vunpack.c.l.b16 %v134
    %v215 = vunpack.c.l.b16 %v135
    %v216 = vunpack.c.l.b16 %v136
    %v217 = vunpack.c.l.b16 %v137
    %v218 = vunpack.c.l.b16 %v138
    %v219 = vunpack.c.l.b16 %v139
    %v220 = vunpack.c.l.b16 %v140
    %v221 = vunpack.c.l.b16 %v141
    %v222 = vunpack.c.l.b16 %v142
    %v223 = vunpack.c.l.b16 %v143
    %v224 = vunpack.c.l.b16 %v144
    %v225 = vunpack.c.l.b16 %v145
    %v226 = vunpack.c.l.b16 %v146
    %v227 = vunpack.c.l.b16 %v147
    %v228 = vunpack.c.l.b16 %v148
    %v229 = vunpack.c.l.b16 %v149
    %v230 = vpack.c.b16 %v215, %v214
    %v231 = vpack.c.b16 %v217, %v216
    %v232 = vpack.c.b16 %v219, %v218
    %v233 = vpack.c.b16 %v221, %v220
    %v234 = vpack.c.b16 %v223, %v222
    %v235 = vpack.c.b16 %v225, %v224
    %v236 = vpack.c.b16 %v227, %v226
    %v237 = vpack.c.b16 %v229, %v228
    %246 = vmatpush.bf16.xpose.msra.mxu0 %v237
    %247 = vmatpush.bf16.xpose.msra.mxu0 %v236
    %248 = vmatpush.bf16.xpose.msra.mxu0 %v235
    %249 = vmatpush.bf16.xpose.msra.mxu0 %v234
    %250 = vmatpush.bf16.xpose.msra.mxu0 %v233
    %251 = vmatpush.bf16.xpose.msra.mxu0 %v232
    %252 = vmatpush.bf16.xpose.msra.mxu0 %v231
    %253 = vmatpush.bf16.xpose.msra.mxu0 %v230
    %254 = vmatmul.bf16.gmra.mxu0 %v182
    %v255 = vpop.f32.mrf.mxu0
    %v256 = vadd.f32 0.0, %v255
    %v257 = vpop.f32.mrf.mxu0
    %v258 = vadd.f32 0.0, %v257
    %259 = vmatmul.bf16.gmra.mxu0 %v183
    %v260 = vpop.f32.mrf.mxu0
    %v261 = vadd.f32 0.0, %v260
    %v262 = vpop.f32.mrf.mxu0
    %v263 = vadd.f32 0.0, %v262
    %264 = vmatmul.bf16.gmra.mxu0 %v184
    %v265 = vpop.f32.mrf.mxu0
    %v266 = vadd.f32 0.0, %v265
    %v267 = vpop.f32.mrf.mxu0
    %v268 = vadd.f32 0.0, %v267
    %269 = vmatmul.bf16.gmra.mxu0 %v185
    %v270 = vpop.f32.mrf.mxu0
    %v271 = vadd.f32 0.0, %v270
    %v272 = vpop.f32.mrf.mxu0
    %v273 = vadd.f32 0.0, %v272
    %274 = vmatmul.bf16.gmra.mxu0 %v186
    %v275 = vpop.f32.mrf.mxu0
    %v276 = vadd.f32 0.0, %v275
    %v277 = vpop.f32.mrf.mxu0
    %v278 = vadd.f32 0.0, %v277
    %279 = vmatmul.bf16.gmra.mxu0 %v187
    %v280 = vpop.f32.mrf.mxu0
    %v281 = vadd.f32 0.0, %v280
    %v282 = vpop.f32.mrf.mxu0
    %v283 = vadd.f32 0.0, %v282
    %284 = vmatmul.bf16.gmra.mxu0 %v188
    %v285 = vpop.f32.mrf.mxu0
    %v286 = vadd.f32 0.0, %v285
    %v287 = vpop.f32.mrf.mxu0
    %v288 = vadd.f32 0.0, %v287
    %289 = vmatmul.bf16.gmra.mxu0 %v189
    %v290 = vpop.f32.mrf.mxu0
    %v291 = vadd.f32 0.0, %v290
    %v292 = vpop.f32.mrf.mxu0
    %v293 = vadd.f32 0.0, %v292
    %294 = vdwg.mxu0
    %v295 = vmul.f32 %v256, 2.0
    %v296 = vmul.f32 %v258, 2.0
    %v297 = vmul.f32 %v261, 2.0
    %v298 = vmul.f32 %v263, 2.0
    %v299 = vmul.f32 %v266, 2.0
    %v300 = vmul.f32 %v268, 2.0
    %v301 = vmul.f32 %v271, 2.0
    %v302 = vmul.f32 %v273, 2.0
    %v303 = vmul.f32 %v276, 2.0
    %v304 = vmul.f32 %v278, 2.0
    %v305 = vmul.f32 %v281, 2.0
    %v306 = vmul.f32 %v283, 2.0
    %v307 = vmul.f32 %v286, 2.0
    %v308 = vmul.f32 %v288, 2.0
    %v309 = vmul.f32 %v291, 2.0
    %v310 = vmul.f32 %v293, 2.0
    %v311 = vld [vmem:[#allocation10] sm:$0xff]
    %v312 = vld [vmem:[#allocation10 + $0x8] sm:$0xff]
    %v313 = vld [vmem:[#allocation10 + $0x10] sm:$0xff]
    %v314 = vld [vmem:[#allocation10 + $0x18] sm:$0xff]
    %v315 = vunpack.c.0.s8 %v311
    %v316 = vunpack.c.1.s8 %v311
    %v317 = vunpack.c.2.s8 %v311
    %v318 = vunpack.c.3.s8 %v311
    %v319 = vunpack.c.0.s8 %v312
    %v320 = vunpack.c.1.s8 %v312
    %v321 = vunpack.c.2.s8 %v312
    %v322 = vunpack.c.3.s8 %v312
    %v323 = vunpack.c.0.s8 %v313
    %v324 = vunpack.c.1.s8 %v313
    %v325 = vunpack.c.2.s8 %v313
    %v326 = vunpack.c.3.s8 %v313
    %v327 = vunpack.c.0.s8 %v314
    %v328 = vunpack.c.1.s8 %v314
    %v329 = vunpack.c.2.s8 %v314
    %v330 = vunpack.c.3.s8 %v314
    %v331 = vcvt.s32.f32 %v315
    %v332 = vcvt.s32.f32 %v316
    %v333 = vcvt.s32.f32 %v317
    %v334 = vcvt.s32.f32 %v318
    %v335 = vcvt.s32.f32 %v319
    %v336 = vcvt.s32.f32 %v320
    %v337 = vcvt.s32.f32 %v321
    %v338 = vcvt.s32.f32 %v322
    %v339 = vcvt.s32.f32 %v323
    %v340 = vcvt.s32.f32 %v324
    %v341 = vcvt.s32.f32 %v325
    %v342 = vcvt.s32.f32 %v326
    %v343 = vcvt.s32.f32 %v327
    %v344 = vcvt.s32.f32 %v328
    %v345 = vcvt.s32.f32 %v329
    %v346 = vcvt.s32.f32 %v330
    %v347 = vld [vmem:[#allocation2] sm:$0xff]
    %v348 = vld [vmem:[#allocation2 + $0x8] sm:$0xff]
    %v349 = vld [vmem:[#allocation2 + $0x10] sm:$0xff]
    %v350 = vld [vmem:[#allocation2 + $0x18] sm:$0xff]
    %v351 = vld [vmem:[#allocation2 + $0x20] sm:$0xff]
    %v352 = vld [vmem:[#allocation2 + $0x28] sm:$0xff]
    %v353 = vld [vmem:[#allocation2 + $0x30] sm:$0xff]
    %v354 = vld [vmem:[#allocation2 + $0x38] sm:$0xff]
    %v355 = vld [vmem:[#allocation2 + $0x40] sm:$0xff]
    %v356 = vld [vmem:[#allocation2 + $0x48] sm:$0xff]
    %v357 = vld [vmem:[#allocation2 + $0x50] sm:$0xff]
    %v358 = vld [vmem:[#allocation2 + $0x58] sm:$0xff]
    %v359 = vld [vmem:[#allocation2 + $0x60] sm:$0xff]
    %v360 = vld [vmem:[#allocation2 + $0x68] sm:$0xff]
    %v361 = vld [vmem:[#allocation2 + $0x70] sm:$0xff]
    %v362 = vld [vmem:[#allocation2 + $0x78] sm:$0xff]
    %363 = vmax.xlane.f32.xlu0 %v295
    %v364 = vpop.xlane.xlu0 %363
    %365 = vmax.xlane.f32.xlu0 %v296
    %v366 = vpop.xlane.xlu0 %365
    %367 = vmax.xlane.f32.xlu0 %v297
    %v368 = vpop.xlane.xlu0 %367
    %369 = vmax.xlane.f32.xlu0 %v298
    %v370 = vpop.xlane.xlu0 %369
    %371 = vmax.xlane.f32.xlu0 %v299
    %v372 = vpop.xlane.xlu0 %371
    %373 = vmax.xlane.f32.xlu0 %v300
    %v374 = vpop.xlane.xlu0 %373
    %375 = vmax.xlane.f32.xlu0 %v301
    %v376 = vpop.xlane.xlu0 %375
    %377 = vmax.xlane.f32.xlu0 %v302
    %v378 = vpop.xlane.xlu0 %377
    %379 = vmax.xlane.f32.xlu0 %v303
    %v380 = vpop.xlane.xlu0 %379
    %381 = vmax.xlane.f32.xlu0 %v304
    %v382 = vpop.xlane.xlu0 %381
    %383 = vmax.xlane.f32.xlu0 %v305
    %v384 = vpop.xlane.xlu0 %383
    %385 = vmax.xlane.f32.xlu0 %v306
    %v386 = vpop.xlane.xlu0 %385
    %387 = vmax.xlane.f32.xlu0 %v307
    %v388 = vpop.xlane.xlu0 %387
    %389 = vmax.xlane.f32.xlu0 %v308
    %v390 = vpop.xlane.xlu0 %389
    %391 = vmax.xlane.f32.xlu0 %v309
    %v392 = vpop.xlane.xlu0 %391
    %393 = vmax.xlane.f32.xlu0 %v310
    %v394 = vpop.xlane.xlu0 %393
    %v395 = vmax.f32 %v347, %v364
    %v396 = vmax.f32 %v348, %v366
    %v397 = vmax.f32 %v349, %v368
    %v398 = vmax.f32 %v350, %v370
    %v399 = vmax.f32 %v351, %v372
    %v400 = vmax.f32 %v352, %v374
    %v401 = vmax.f32 %v353, %v376
    %v402 = vmax.f32 %v354, %v378
    %v403 = vmax.f32 %v355, %v380
    %v404 = vmax.f32 %v356, %v382
    %v405 = vmax.f32 %v357, %v384
    %v406 = vmax.f32 %v358, %v386
    %v407 = vmax.f32 %v359, %v388
    %v408 = vmax.f32 %v360, %v390
    %v409 = vmax.f32 %v361, %v392
    %v410 = vmax.f32 %v362, %v394
    %412 = vset.pattern.permute.xlu0 0
    %413 = vperm.xlu0 %412, %v395
    %v414 = vpop.permute.xlu0 %413
    %417 = vset.pattern.permute.xlu0 0
    %418 = vperm.xlu0 %417, %v396
    %v419 = vpop.permute.xlu0 %418
    %422 = vset.pattern.permute.xlu0 0
    %423 = vperm.xlu0 %422, %v397
    %v424 = vpop.permute.xlu0 %423
    %427 = vset.pattern.permute.xlu0 0
    %428 = vperm.xlu0 %427, %v398
    %v429 = vpop.permute.xlu0 %428
    %432 = vset.pattern.permute.xlu0 0
    %433 = vperm.xlu0 %432, %v399
    %v434 = vpop.permute.xlu0 %433
    %437 = vset.pattern.permute.xlu0 0
    %438 = vperm.xlu0 %437, %v400
    %v439 = vpop.permute.xlu0 %438
    %442 = vset.pattern.permute.xlu0 0
    %443 = vperm.xlu0 %442, %v401
    %v444 = vpop.permute.xlu0 %443
    %447 = vset.pattern.permute.xlu0 0
    %448 = vperm.xlu0 %447, %v402
    %v449 = vpop.permute.xlu0 %448
    %452 = vset.pattern.permute.xlu0 0
    %453 = vperm.xlu0 %452, %v403
    %v454 = vpop.permute.xlu0 %453
    %457 = vset.pattern.permute.xlu0 0
    %458 = vperm.xlu0 %457, %v404
    %v459 = vpop.permute.xlu0 %458
    %462 = vset.pattern.permute.xlu0 0
    %463 = vperm.xlu0 %462, %v405
    %v464 = vpop.permute.xlu0 %463
    %467 = vset.pattern.permute.xlu0 0
    %468 = vperm.xlu0 %467, %v406
    %v469 = vpop.permute.xlu0 %468
    %472 = vset.pattern.permute.xlu0 0
    %473 = vperm.xlu0 %472, %v407
    %v474 = vpop.permute.xlu0 %473
    %477 = vset.pattern.permute.xlu0 0
    %478 = vperm.xlu0 %477, %v408
    %v479 = vpop.permute.xlu0 %478
    %482 = vset.pattern.permute.xlu0 0
    %483 = vperm.xlu0 %482, %v409
    %v484 = vpop.permute.xlu0 %483
    %487 = vset.pattern.permute.xlu0 0
    %488 = vperm.xlu0 %487, %v410
    %v489 = vpop.permute.xlu0 %488
    %v491 = vsub.f32 %v295, %v414
    %v492 = vsub.f32 %v296, %v419
    %v493 = vsub.f32 %v297, %v424
    %v494 = vsub.f32 %v298, %v429
    %v495 = vsub.f32 %v299, %v434
    %v496 = vsub.f32 %v300, %v439
    %v497 = vsub.f32 %v301, %v444
    %v498 = vsub.f32 %v302, %v449
    %v499 = vsub.f32 %v303, %v454
    %v500 = vsub.f32 %v304, %v459
    %v501 = vsub.f32 %v305, %v464
    %v502 = vsub.f32 %v306, %v469
    %v503 = vsub.f32 %v307, %v474
    %v504 = vsub.f32 %v308, %v479
    %v505 = vsub.f32 %v309, %v484
    %v506 = vsub.f32 %v310, %v489
    %v507 = vmul.f32 %v491, 1.442695
    %v508 = vpow.pop %v507
    %v509 = vmul.f32 %v492, 1.442695
    %v510 = vpow.pop %v509
    %v511 = vmul.f32 %v493, 1.442695
    %v512 = vpow.pop %v511
    %v513 = vmul.f32 %v494, 1.442695
    %v514 = vpow.pop %v513
    %v515 = vmul.f32 %v495, 1.442695
    %v516 = vpow.pop %v515
    %v517 = vmul.f32 %v496, 1.442695
    %v518 = vpow.pop %v517
    %v519 = vmul.f32 %v497, 1.442695
    %v520 = vpow.pop %v519
    %v521 = vmul.f32 %v498, 1.442695
    %v522 = vpow.pop %v521
    %v523 = vmul.f32 %v499, 1.442695
    %v524 = vpow.pop %v523
    %v525 = vmul.f32 %v500, 1.442695
    %v526 = vpow.pop %v525
    %v527 = vmul.f32 %v501, 1.442695
    %v528 = vpow.pop %v527
    %v529 = vmul.f32 %v502, 1.442695
    %v530 = vpow.pop %v529
    %v531 = vmul.f32 %v503, 1.442695
    %v532 = vpow.pop %v531
    %v533 = vmul.f32 %v504, 1.442695
    %v534 = vpow.pop %v533
    %v535 = vmul.f32 %v505, 1.442695
    %v536 = vpow.pop %v535
    %v537 = vmul.f32 %v506, 1.442695
    %v538 = vpow.pop %v537
    %s539 = smul.u32 0, 128
    %v540 = vlaneseq
    %v541 = vand.u32 %v540, 127
    %v542 = vstv %s539
    %v543 = vadd.s32 %v542, %v541
    %vm544 = vcmp.lt.s32.totalorder %v543, 16
    %v545 = vsel %vm544, %v508, 0.0
    %v546 = vsel %vm544, %v510, 0.0
    %v547 = vsel %vm544, %v512, 0.0
    %v548 = vsel %vm544, %v514, 0.0
    %v549 = vsel %vm544, %v516, 0.0
    %v550 = vsel %vm544, %v518, 0.0
    %v551 = vsel %vm544, %v520, 0.0
    %v552 = vsel %vm544, %v522, 0.0
    %v553 = vsel %vm544, %v524, 0.0
    %v554 = vsel %vm544, %v526, 0.0
    %v555 = vsel %vm544, %v528, 0.0
    %v556 = vsel %vm544, %v530, 0.0
    %v557 = vsel %vm544, %v532, 0.0
    %v558 = vsel %vm544, %v534, 0.0
    %v559 = vsel %vm544, %v536, 0.0
    %v560 = vsel %vm544, %v538, 0.0
    %v561 = vld [vmem:[#allocation3] sm:$0xff]
    %v562 = vld [vmem:[#allocation3 + $0x8] sm:$0xff]
    %v563 = vld [vmem:[#allocation3 + $0x10] sm:$0xff]
    %v564 = vld [vmem:[#allocation3 + $0x18] sm:$0xff]
    %v565 = vld [vmem:[#allocation3 + $0x20] sm:$0xff]
    %v566 = vld [vmem:[#allocation3 + $0x28] sm:$0xff]
    %v567 = vld [vmem:[#allocation3 + $0x30] sm:$0xff]
    %v568 = vld [vmem:[#allocation3 + $0x38] sm:$0xff]
    %v569 = vld [vmem:[#allocation3 + $0x40] sm:$0xff]
    %v570 = vld [vmem:[#allocation3 + $0x48] sm:$0xff]
    %v571 = vld [vmem:[#allocation3 + $0x50] sm:$0xff]
    %v572 = vld [vmem:[#allocation3 + $0x58] sm:$0xff]
    %v573 = vld [vmem:[#allocation3 + $0x60] sm:$0xff]
    %v574 = vld [vmem:[#allocation3 + $0x68] sm:$0xff]
    %v575 = vld [vmem:[#allocation3 + $0x70] sm:$0xff]
    %v576 = vld [vmem:[#allocation3 + $0x78] sm:$0xff]
    %v577 = vsub.f32 %v347, %v395
    %v578 = vsub.f32 %v348, %v396
    %v579 = vsub.f32 %v349, %v397
    %v580 = vsub.f32 %v350, %v398
    %v581 = vsub.f32 %v351, %v399
    %v582 = vsub.f32 %v352, %v400
    %v583 = vsub.f32 %v353, %v401
    %v584 = vsub.f32 %v354, %v402
    %v585 = vsub.f32 %v355, %v403
    %v586 = vsub.f32 %v356, %v404
    %v587 = vsub.f32 %v357, %v405
    %v588 = vsub.f32 %v358, %v406
    %v589 = vsub.f32 %v359, %v407
    %v590 = vsub.f32 %v360, %v408
    %v591 = vsub.f32 %v361, %v409
    %v592 = vsub.f32 %v362, %v410
    %v593 = vmul.f32 %v577, 1.442695
    %v594 = vpow.pop %v593
    %v595 = vmul.f32 %v578, 1.442695
    %v596 = vpow.pop %v595
    %v597 = vmul.f32 %v579, 1.442695
    %v598 = vpow.pop %v597
    %v599 = vmul.f32 %v580, 1.442695
    %v600 = vpow.pop %v599
    %v601 = vmul.f32 %v581, 1.442695
    %v602 = vpow.pop %v601
    %v603 = vmul.f32 %v582, 1.442695
    %v604 = vpow.pop %v603
    %v605 = vmul.f32 %v583, 1.442695
    %v606 = vpow.pop %v605
    %v607 = vmul.f32 %v584, 1.442695
    %v608 = vpow.pop %v607
    %v609 = vmul.f32 %v585, 1.442695
    %v610 = vpow.pop %v609
    %v611 = vmul.f32 %v586, 1.442695
    %v612 = vpow.pop %v611
    %v613 = vmul.f32 %v587, 1.442695
    %v614 = vpow.pop %v613
    %v615 = vmul.f32 %v588, 1.442695
    %v616 = vpow.pop %v615
    %v617 = vmul.f32 %v589, 1.442695
    %v618 = vpow.pop %v617
    %v619 = vmul.f32 %v590, 1.442695
    %v620 = vpow.pop %v619
    %v621 = vmul.f32 %v591, 1.442695
    %v622 = vpow.pop %v621
    %v623 = vmul.f32 %v592, 1.442695
    %v624 = vpow.pop %v623
    %v625 = vmul.f32 %v561, %v594
    %v626 = vmul.f32 %v562, %v596
    %v627 = vmul.f32 %v563, %v598
    %v628 = vmul.f32 %v564, %v600
    %v629 = vmul.f32 %v565, %v602
    %v630 = vmul.f32 %v566, %v604
    %v631 = vmul.f32 %v567, %v606
    %v632 = vmul.f32 %v568, %v608
    %v633 = vmul.f32 %v569, %v610
    %v634 = vmul.f32 %v570, %v612
    %v635 = vmul.f32 %v571, %v614
    %v636 = vmul.f32 %v572, %v616
    %v637 = vmul.f32 %v573, %v618
    %v638 = vmul.f32 %v574, %v620
    %v639 = vmul.f32 %v575, %v622
    %v640 = vmul.f32 %v576, %v624
    %641 = vadd.xlane.f32.xlu0 %v545
    %v642 = vpop.xlane.xlu0 %641
    %643 = vadd.xlane.f32.xlu0 %v546
    %v644 = vpop.xlane.xlu0 %643
    %645 = vadd.xlane.f32.xlu0 %v547
    %v646 = vpop.xlane.xlu0 %645
    %647 = vadd.xlane.f32.xlu0 %v548
    %v648 = vpop.xlane.xlu0 %647
    %649 = vadd.xlane.f32.xlu0 %v549
    %v650 = vpop.xlane.xlu0 %649
    %651 = vadd.xlane.f32.xlu0 %v550
    %v652 = vpop.xlane.xlu0 %651
    %653 = vadd.xlane.f32.xlu0 %v551
    %v654 = vpop.xlane.xlu0 %653
    %655 = vadd.xlane.f32.xlu0 %v552
    %v656 = vpop.xlane.xlu0 %655
    %657 = vadd.xlane.f32.xlu0 %v553
    %v658 = vpop.xlane.xlu0 %657
    %659 = vadd.xlane.f32.xlu0 %v554
    %v660 = vpop.xlane.xlu0 %659
    %661 = vadd.xlane.f32.xlu0 %v555
    %v662 = vpop.xlane.xlu0 %661
    %663 = vadd.xlane.f32.xlu0 %v556
    %v664 = vpop.xlane.xlu0 %663
    %665 = vadd.xlane.f32.xlu0 %v557
    %v666 = vpop.xlane.xlu0 %665
    %667 = vadd.xlane.f32.xlu0 %v558
    %v668 = vpop.xlane.xlu0 %667
    %669 = vadd.xlane.f32.xlu0 %v559
    %v670 = vpop.xlane.xlu0 %669
    %671 = vadd.xlane.f32.xlu0 %v560
    %v672 = vpop.xlane.xlu0 %671
    %v673 = vadd.f32 %v625, %v642
    %v674 = vadd.f32 %v626, %v644
    %v675 = vadd.f32 %v627, %v646
    %v676 = vadd.f32 %v628, %v648
    %v677 = vadd.f32 %v629, %v650
    %v678 = vadd.f32 %v630, %v652
    %v679 = vadd.f32 %v631, %v654
    %v680 = vadd.f32 %v632, %v656
    %v681 = vadd.f32 %v633, %v658
    %v682 = vadd.f32 %v634, %v660
    %v683 = vadd.f32 %v635, %v662
    %v684 = vadd.f32 %v636, %v664
    %v685 = vadd.f32 %v637, %v666
    %v686 = vadd.f32 %v638, %v668
    %v687 = vadd.f32 %v639, %v670
    %v688 = vadd.f32 %v640, %v672
    %vm689 = vcmask 7168
    %690 = vst.msk [vmem:[#allocation3] sm:$0xff] %vm689, %v673
    %691 = vst.msk [vmem:[#allocation3 + $0x8] sm:$0xff] %vm689, %v674
    %692 = vst.msk [vmem:[#allocation3 + $0x10] sm:$0xff] %vm689, %v675
    %693 = vst.msk [vmem:[#allocation3 + $0x18] sm:$0xff] %vm689, %v676
    %694 = vst.msk [vmem:[#allocation3 + $0x20] sm:$0xff] %vm689, %v677
    %695 = vst.msk [vmem:[#allocation3 + $0x28] sm:$0xff] %vm689, %v678
    %696 = vst.msk [vmem:[#allocation3 + $0x30] sm:$0xff] %vm689, %v679
    %697 = vst.msk [vmem:[#allocation3 + $0x38] sm:$0xff] %vm689, %v680
    %698 = vst.msk [vmem:[#allocation3 + $0x40] sm:$0xff] %vm689, %v681
    %699 = vst.msk [vmem:[#allocation3 + $0x48] sm:$0xff] %vm689, %v682
    %700 = vst.msk [vmem:[#allocation3 + $0x50] sm:$0xff] %vm689, %v683
    %701 = vst.msk [vmem:[#allocation3 + $0x58] sm:$0xff] %vm689, %v684
    %702 = vst.msk [vmem:[#allocation3 + $0x60] sm:$0xff] %vm689, %v685
    %703 = vst.msk [vmem:[#allocation3 + $0x68] sm:$0xff] %vm689, %v686
    %704 = vst.msk [vmem:[#allocation3 + $0x70] sm:$0xff] %vm689, %v687
    %705 = vst.msk [vmem:[#allocation3 + $0x78] sm:$0xff] %vm689, %v688
    %v706 = vld [vmem:[#allocation4] sm:$0xff]
    %v707 = vld [vmem:[#allocation4 + $0x8] sm:$0xff]
    %v708 = vld [vmem:[#allocation4 + $0x10] sm:$0xff]
    %v709 = vld [vmem:[#allocation4 + $0x18] sm:$0xff]
    %v710 = vld [vmem:[#allocation4 + $0x20] sm:$0xff]
    %v711 = vld [vmem:[#allocation4 + $0x28] sm:$0xff]
    %v712 = vld [vmem:[#allocation4 + $0x30] sm:$0xff]
    %v713 = vld [vmem:[#allocation4 + $0x38] sm:$0xff]
    %v714 = vld [vmem:[#allocation4 + $0x40] sm:$0xff]
    %v715 = vld [vmem:[#allocation4 + $0x48] sm:$0xff]
    %v716 = vld [vmem:[#allocation4 + $0x50] sm:$0xff]
    %v717 = vld [vmem:[#allocation4 + $0x58] sm:$0xff]
    %v718 = vld [vmem:[#allocation4 + $0x60] sm:$0xff]
    %v719 = vld [vmem:[#allocation4 + $0x68] sm:$0xff]
    %v720 = vld [vmem:[#allocation4 + $0x70] sm:$0xff]
    %v721 = vld [vmem:[#allocation4 + $0x78] sm:$0xff]
    %v722 = vmul.f32 %v331, %v295
    %v723 = vmul.f32 %v332, %v296
    %v724 = vmul.f32 %v333, %v297
    %v725 = vmul.f32 %v334, %v298
    %v726 = vmul.f32 %v335, %v299
    %v727 = vmul.f32 %v336, %v300
    %v728 = vmul.f32 %v337, %v301
    %v729 = vmul.f32 %v338, %v302
    %v730 = vmul.f32 %v339, %v303
    %v731 = vmul.f32 %v340, %v304
    %v732 = vmul.f32 %v341, %v305
    %v733 = vmul.f32 %v342, %v306
    %v734 = vmul.f32 %v343, %v307
    %v735 = vmul.f32 %v344, %v308
    %v736 = vmul.f32 %v345, %v309
    %v737 = vmul.f32 %v346, %v310
    %738 = vadd.xlane.f32.xlu0 %v722
    %v739 = vpop.xlane.xlu0 %738
    %740 = vadd.xlane.f32.xlu0 %v723
    %v741 = vpop.xlane.xlu0 %740
    %742 = vadd.xlane.f32.xlu0 %v724
    %v743 = vpop.xlane.xlu0 %742
    %744 = vadd.xlane.f32.xlu0 %v725
    %v745 = vpop.xlane.xlu0 %744
    %746 = vadd.xlane.f32.xlu0 %v726
    %v747 = vpop.xlane.xlu0 %746
    %748 = vadd.xlane.f32.xlu0 %v727
    %v749 = vpop.xlane.xlu0 %748
    %750 = vadd.xlane.f32.xlu0 %v728
    %v751 = vpop.xlane.xlu0 %750
    %752 = vadd.xlane.f32.xlu0 %v729
    %v753 = vpop.xlane.xlu0 %752
    %754 = vadd.xlane.f32.xlu0 %v730
    %v755 = vpop.xlane.xlu0 %754
    %756 = vadd.xlane.f32.xlu0 %v731
    %v757 = vpop.xlane.xlu0 %756
    %758 = vadd.xlane.f32.xlu0 %v732
    %v759 = vpop.xlane.xlu0 %758
    %760 = vadd.xlane.f32.xlu0 %v733
    %v761 = vpop.xlane.xlu0 %760
    %762 = vadd.xlane.f32.xlu0 %v734
    %v763 = vpop.xlane.xlu0 %762
    %764 = vadd.xlane.f32.xlu0 %v735
    %v765 = vpop.xlane.xlu0 %764
    %766 = vadd.xlane.f32.xlu0 %v736
    %v767 = vpop.xlane.xlu0 %766
    %768 = vadd.xlane.f32.xlu0 %v737
    %v769 = vpop.xlane.xlu0 %768
    %v770 = vadd.f32 %v706, %v739
    %v771 = vadd.f32 %v707, %v741
    %v772 = vadd.f32 %v708, %v743
    %v773 = vadd.f32 %v709, %v745
    %v774 = vadd.f32 %v710, %v747
    %v775 = vadd.f32 %v711, %v749
    %v776 = vadd.f32 %v712, %v751
    %v777 = vadd.f32 %v713, %v753
    %v778 = vadd.f32 %v714, %v755
    %v779 = vadd.f32 %v715, %v757
    %v780 = vadd.f32 %v716, %v759
    %v781 = vadd.f32 %v717, %v761
    %v782 = vadd.f32 %v718, %v763
    %v783 = vadd.f32 %v719, %v765
    %v784 = vadd.f32 %v720, %v767
    %v785 = vadd.f32 %v721, %v769
    %786 = vst.msk [vmem:[#allocation4] sm:$0xff] %vm689, %v770
    %787 = vst.msk [vmem:[#allocation4 + $0x8] sm:$0xff] %vm689, %v771
    %788 = vst.msk [vmem:[#allocation4 + $0x10] sm:$0xff] %vm689, %v772
    %789 = vst.msk [vmem:[#allocation4 + $0x18] sm:$0xff] %vm689, %v773
    %790 = vst.msk [vmem:[#allocation4 + $0x20] sm:$0xff] %vm689, %v774
    %791 = vst.msk [vmem:[#allocation4 + $0x28] sm:$0xff] %vm689, %v775
    %792 = vst.msk [vmem:[#allocation4 + $0x30] sm:$0xff] %vm689, %v776
    %793 = vst.msk [vmem:[#allocation4 + $0x38] sm:$0xff] %vm689, %v777
    %794 = vst.msk [vmem:[#allocation4 + $0x40] sm:$0xff] %vm689, %v778
    %795 = vst.msk [vmem:[#allocation4 + $0x48] sm:$0xff] %vm689, %v779
    %796 = vst.msk [vmem:[#allocation4 + $0x50] sm:$0xff] %vm689, %v780
    %797 = vst.msk [vmem:[#allocation4 + $0x58] sm:$0xff] %vm689, %v781
    %798 = vst.msk [vmem:[#allocation4 + $0x60] sm:$0xff] %vm689, %v782
    %799 = vst.msk [vmem:[#allocation4 + $0x68] sm:$0xff] %vm689, %v783
    %800 = vst.msk [vmem:[#allocation4 + $0x70] sm:$0xff] %vm689, %v784
    %801 = vst.msk [vmem:[#allocation4 + $0x78] sm:$0xff] %vm689, %v785
    %802 = vst.msk [vmem:[#allocation2] sm:$0xff] %vm689, %v395
    %803 = vst.msk [vmem:[#allocation2 + $0x8] sm:$0xff] %vm689, %v396
    %804 = vst.msk [vmem:[#allocation2 + $0x10] sm:$0xff] %vm689, %v397
    %805 = vst.msk [vmem:[#allocation2 + $0x18] sm:$0xff] %vm689, %v398
    %806 = vst.msk [vmem:[#allocation2 + $0x20] sm:$0xff] %vm689, %v399
    %807 = vst.msk [vmem:[#allocation2 + $0x28] sm:$0xff] %vm689, %v400
    %808 = vst.msk [vmem:[#allocation2 + $0x30] sm:$0xff] %vm689, %v401
    %809 = vst.msk [vmem:[#allocation2 + $0x38] sm:$0xff] %vm689, %v402
    %810 = vst.msk [vmem:[#allocation2 + $0x40] sm:$0xff] %vm689, %v403
    %811 = vst.msk [vmem:[#allocation2 + $0x48] sm:$0xff] %vm689, %v404
    %812 = vst.msk [vmem:[#allocation2 + $0x50] sm:$0xff] %vm689, %v405
    %813 = vst.msk [vmem:[#allocation2 + $0x58] sm:$0xff] %vm689, %v406
    %814 = vst.msk [vmem:[#allocation2 + $0x60] sm:$0xff] %vm689, %v407
    %815 = vst.msk [vmem:[#allocation2 + $0x68] sm:$0xff] %vm689, %v408
    %816 = vst.msk [vmem:[#allocation2 + $0x70] sm:$0xff] %vm689, %v409
    %817 = vst.msk [vmem:[#allocation2 + $0x78] sm:$0xff] %vm689, %v410
    // Predicated region
    $region30: #{tpu_custom_call.1} parent=1 // pred_check
      %p818 = pneg %p65
    $region31: #{tpu_custom_call.1} parent=1 // pred_check_branch
      %820 = sbr.rel (%p818) target = $region33
    $region32: #{tpu_custom_call.1} parent=1 // pred_region
      %v821 = vld [vmem:[#allocation4] sm:$0xff]
      %v822 = vld [vmem:[#allocation4 + $0x8] sm:$0xff]
      %v823 = vld [vmem:[#allocation4 + $0x10] sm:$0xff]
      %v824 = vld [vmem:[#allocation4 + $0x18] sm:$0xff]
      %v825 = vld [vmem:[#allocation4 + $0x20] sm:$0xff]
      %v826 = vld [vmem:[#allocation4 + $0x28] sm:$0xff]
      %v827 = vld [vmem:[#allocation4 + $0x30] sm:$0xff]
      %v828 = vld [vmem:[#allocation4 + $0x38] sm:$0xff]
      %v829 = vld [vmem:[#allocation4 + $0x40] sm:$0xff]
      %v830 = vld [vmem:[#allocation4 + $0x48] sm:$0xff]
      %v831 = vld [vmem:[#allocation4 + $0x50] sm:$0xff]
      %v832 = vld [vmem:[#allocation4 + $0x58] sm:$0xff]
      %v833 = vld [vmem:[#allocation4 + $0x60] sm:$0xff]
      %v834 = vld [vmem:[#allocation4 + $0x68] sm:$0xff]
      %v835 = vld [vmem:[#allocation4 + $0x70] sm:$0xff]
      %v836 = vld [vmem:[#allocation4 + $0x78] sm:$0xff]
      %838 = vset.pattern.permute.xlu0 0
      %839 = vperm.xlu0 %838, %v821
      %v840 = vpop.permute.xlu0 %839
      %843 = vset.pattern.permute.xlu0 0
      %844 = vperm.xlu0 %843, %v822
      %v845 = vpop.permute.xlu0 %844
      %848 = vset.pattern.permute.xlu0 0
      %849 = vperm.xlu0 %848, %v823
      %v850 = vpop.permute.xlu0 %849
      %853 = vset.pattern.permute.xlu0 0
      %854 = vperm.xlu0 %853, %v824
      %v855 = vpop.permute.xlu0 %854
      %858 = vset.pattern.permute.xlu0 0
      %859 = vperm.xlu0 %858, %v825
      %v860 = vpop.permute.xlu0 %859
      %863 = vset.pattern.permute.xlu0 0
      %864 = vperm.xlu0 %863, %v826
      %v865 = vpop.permute.xlu0 %864
      %868 = vset.pattern.permute.xlu0 0
      %869 = vperm.xlu0 %868, %v827
      %v870 = vpop.permute.xlu0 %869
      %873 = vset.pattern.permute.xlu0 0
      %874 = vperm.xlu0 %873, %v828
      %v875 = vpop.permute.xlu0 %874
      %878 = vset.pattern.permute.xlu0 0
      %879 = vperm.xlu0 %878, %v829
      %v880 = vpop.permute.xlu0 %879
      %883 = vset.pattern.permute.xlu0 0
      %884 = vperm.xlu0 %883, %v830
      %v885 = vpop.permute.xlu0 %884
      %888 = vset.pattern.permute.xlu0 0
      %889 = vperm.xlu0 %888, %v831
      %v890 = vpop.permute.xlu0 %889
      %893 = vset.pattern.permute.xlu0 0
      %894 = vperm.xlu0 %893, %v832
      %v895 = vpop.permute.xlu0 %894
      %898 = vset.pattern.permute.xlu0 0
      %899 = vperm.xlu0 %898, %v833
      %v900 = vpop.permute.xlu0 %899
      %903 = vset.pattern.permute.xlu0 0
      %904 = vperm.xlu0 %903, %v834
      %v905 = vpop.permute.xlu0 %904
      %908 = vset.pattern.permute.xlu0 0
      %909 = vperm.xlu0 %908, %v835
      %v910 = vpop.permute.xlu0 %909
      %913 = vset.pattern.permute.xlu0 0
      %914 = vperm.xlu0 %913, %v836
      %v915 = vpop.permute.xlu0 %914
      %917 = vst [vmem:[#allocation11] sm:$0xff] %v840
      %918 = vst [vmem:[#allocation11 + $0x8] sm:$0xff] %v845
      %919 = vst [vmem:[#allocation11 + $0x10] sm:$0xff] %v850
      %920 = vst [vmem:[#allocation11 + $0x18] sm:$0xff] %v855
      %921 = vst [vmem:[#allocation11 + $0x20] sm:$0xff] %v860
      %922 = vst [vmem:[#allocation11 + $0x28] sm:$0xff] %v865
      %923 = vst [vmem:[#allocation11 + $0x30] sm:$0xff] %v870
      %924 = vst [vmem:[#allocation11 + $0x38] sm:$0xff] %v875
      %925 = vst [vmem:[#allocation11 + $0x40] sm:$0xff] %v880
      %926 = vst [vmem:[#allocation11 + $0x48] sm:$0xff] %v885
      %927 = vst [vmem:[#allocation11 + $0x50] sm:$0xff] %v890
      %928 = vst [vmem:[#allocation11 + $0x58] sm:$0xff] %v895
      %929 = vst [vmem:[#allocation11 + $0x60] sm:$0xff] %v900
      %930 = vst [vmem:[#allocation11 + $0x68] sm:$0xff] %v905
      %931 = vst [vmem:[#allocation11 + $0x70] sm:$0xff] %v910
      %932 = vst [vmem:[#allocation11 + $0x78] sm:$0xff] %v915
      %v933 = vld [vmem:[#allocation2] sm:$0xff]
      %v934 = vld [vmem:[#allocation2 + $0x8] sm:$0xff]
      %v935 = vld [vmem:[#allocation2 + $0x10] sm:$0xff]
      %v936 = vld [vmem:[#allocation2 + $0x18] sm:$0xff]
      %v937 = vld [vmem:[#allocation2 + $0x20] sm:$0xff]
      %v938 = vld [vmem:[#allocation2 + $0x28] sm:$0xff]
      %v939 = vld [vmem:[#allocation2 + $0x30] sm:$0xff]
      %v940 = vld [vmem:[#allocation2 + $0x38] sm:$0xff]
      %v941 = vld [vmem:[#allocation2 + $0x40] sm:$0xff]
      %v942 = vld [vmem:[#allocation2 + $0x48] sm:$0xff]
      %v943 = vld [vmem:[#allocation2 + $0x50] sm:$0xff]
      %v944 = vld [vmem:[#allocation2 + $0x58] sm:$0xff]
      %v945 = vld [vmem:[#allocation2 + $0x60] sm:$0xff]
      %v946 = vld [vmem:[#allocation2 + $0x68] sm:$0xff]
      %v947 = vld [vmem:[#allocation2 + $0x70] sm:$0xff]
      %v948 = vld [vmem:[#allocation2 + $0x78] sm:$0xff]
      %v949 = vld [vmem:[#allocation3] sm:$0xff]
      %v950 = vld [vmem:[#allocation3 + $0x8] sm:$0xff]
      %v951 = vld [vmem:[#allocation3 + $0x10] sm:$0xff]
      %v952 = vld [vmem:[#allocation3 + $0x18] sm:$0xff]
      %v953 = vld [vmem:[#allocation3 + $0x20] sm:$0xff]
      %v954 = vld [vmem:[#allocation3 + $0x28] sm:$0xff]
      %v955 = vld [vmem:[#allocation3 + $0x30] sm:$0xff]
      %v956 = vld [vmem:[#allocation3 + $0x38] sm:$0xff]
      %v957 = vld [vmem:[#allocation3 + $0x40] sm:$0xff]
      %v958 = vld [vmem:[#allocation3 + $0x48] sm:$0xff]
      %v959 = vld [vmem:[#allocation3 + $0x50] sm:$0xff]
      %v960 = vld [vmem:[#allocation3 + $0x58] sm:$0xff]
      %v961 = vld [vmem:[#allocation3 + $0x60] sm:$0xff]
      %v962 = vld [vmem:[#allocation3 + $0x68] sm:$0xff]
      %v963 = vld [vmem:[#allocation3 + $0x70] sm:$0xff]
      %v964 = vld [vmem:[#allocation3 + $0x78] sm:$0xff]
      %v965 = vlog2.pop %v949
      %v966 = vmul.f32 %v965, 0.6931472
      %v967 = vlog2.pop %v950
      %v968 = vmul.f32 %v967, 0.6931472
      %v969 = vlog2.pop %v951
      %v970 = vmul.f32 %v969, 0.6931472
      %v971 = vlog2.pop %v952
      %v972 = vmul.f32 %v971, 0.6931472
      %v973 = vlog2.pop %v953
      %v974 = vmul.f32 %v973, 0.6931472
      %v975 = vlog2.pop %v954
      %v976 = vmul.f32 %v975, 0.6931472
      %v977 = vlog2.pop %v955
      %v978 = vmul.f32 %v977, 0.6931472
      %v979 = vlog2.pop %v956
      %v980 = vmul.f32 %v979, 0.6931472
      %v981 = vlog2.pop %v957
      %v982 = vmul.f32 %v981, 0.6931472
      %v983 = vlog2.pop %v958
      %v984 = vmul.f32 %v983, 0.6931472
      %v985 = vlog2.pop %v959
      %v986 = vmul.f32 %v985, 0.6931472
      %v987 = vlog2.pop %v960
      %v988 = vmul.f32 %v987, 0.6931472
      %v989 = vlog2.pop %v961
      %v990 = vmul.f32 %v989, 0.6931472
      %v991 = vlog2.pop %v962
      %v992 = vmul.f32 %v991, 0.6931472
      %v993 = vlog2.pop %v963
      %v994 = vmul.f32 %v993, 0.6931472
      %v995 = vlog2.pop %v964
      %v996 = vmul.f32 %v995, 0.6931472
      %v997 = vadd.f32 %v933, %v966
      %v998 = vadd.f32 %v934, %v968
      %v999 = vadd.f32 %v935, %v970
      %v1000 = vadd.f32 %v936, %v972
      %v1001 = vadd.f32 %v937, %v974
      %v1002 = vadd.f32 %v938, %v976
      %v1003 = vadd.f32 %v939, %v978
      %v1004 = vadd.f32 %v940, %v980
      %v1005 = vadd.f32 %v941, %v982
      %v1006 = vadd.f32 %v942, %v984
      %v1007 = vadd.f32 %v943, %v986
      %v1008 = vadd.f32 %v944, %v988
      %v1009 = vadd.f32 %v945, %v990
      %v1010 = vadd.f32 %v946, %v992
      %v1011 = vadd.f32 %v947, %v994
      %v1012 = vadd.f32 %v948, %v996
      %1014 = vset.pattern.permute.xlu0 0
      %1015 = vperm.xlu0 %1014, %v997
      %v1016 = vpop.permute.xlu0 %1015
      %1019 = vset.pattern.permute.xlu0 0
      %1020 = vperm.xlu0 %1019, %v998
      %v1021 = vpop.permute.xlu0 %1020
      %1024 = vset.pattern.permute.xlu0 0
      %1025 = vperm.xlu0 %1024, %v999
      %v1026 = vpop.permute.xlu0 %1025
      %1029 = vset.pattern.permute.xlu0 0
      %1030 = vperm.xlu0 %1029, %v1000
      %v1031 = vpop.permute.xlu0 %1030
      %1034 = vset.pattern.permute.xlu0 0
      %1035 = vperm.xlu0 %1034, %v1001
      %v1036 = vpop.permute.xlu0 %1035
      %1039 = vset.pattern.permute.xlu0 0
      %1040 = vperm.xlu0 %1039, %v1002
      %v1041 = vpop.permute.xlu0 %1040
      %1044 = vset.pattern.permute.xlu0 0
      %1045 = vperm.xlu0 %1044, %v1003
      %v1046 = vpop.permute.xlu0 %1045
      %1049 = vset.pattern.permute.xlu0 0
      %1050 = vperm.xlu0 %1049, %v1004
      %v1051 = vpop.permute.xlu0 %1050
      %1054 = vset.pattern.permute.xlu0 0
      %1055 = vperm.xlu0 %1054, %v1005
      %v1056 = vpop.permute.xlu0 %1055
      %1059 = vset.pattern.permute.xlu0 0
      %1060 = vperm.xlu0 %1059, %v1006
      %v1061 = vpop.permute.xlu0 %1060
      %1064 = vset.pattern.permute.xlu0 0
      %1065 = vperm.xlu0 %1064, %v1007
      %v1066 = vpop.permute.xlu0 %1065
      %1069 = vset.pattern.permute.xlu0 0
      %1070 = vperm.xlu0 %1069, %v1008
      %v1071 = vpop.permute.xlu0 %1070
      %1074 = vset.pattern.permute.xlu0 0
      %1075 = vperm.xlu0 %1074, %v1009
      %v1076 = vpop.permute.xlu0 %1075
      %1079 = vset.pattern.permute.xlu0 0
      %1080 = vperm.xlu0 %1079, %v1010
      %v1081 = vpop.permute.xlu0 %1080
      %1084 = vset.pattern.permute.xlu0 0
      %1085 = vperm.xlu0 %1084, %v1011
      %v1086 = vpop.permute.xlu0 %1085
      %1089 = vset.pattern.permute.xlu0 0
      %1090 = vperm.xlu0 %1089, %v1012
      %v1091 = vpop.permute.xlu0 %1090
      %1093 = vst [vmem:[#allocation12] sm:$0xff] %v1016
      %1094 = vst [vmem:[#allocation12 + $0x8] sm:$0xff] %v1021
      %1095 = vst [vmem:[#allocation12 + $0x10] sm:$0xff] %v1026
      %1096 = vst [vmem:[#allocation12 + $0x18] sm:$0xff] %v1031
      %1097 = vst [vmem:[#allocation12 + $0x20] sm:$0xff] %v1036
      %1098 = vst [vmem:[#allocation12 + $0x28] sm:$0xff] %v1041
      %1099 = vst [vmem:[#allocation12 + $0x30] sm:$0xff] %v1046
      %1100 = vst [vmem:[#allocation12 + $0x38] sm:$0xff] %v1051
      %1101 = vst [vmem:[#allocation12 + $0x40] sm:$0xff] %v1056
      %1102 = vst [vmem:[#allocation12 + $0x48] sm:$0xff] %v1061
      %1103 = vst [vmem:[#allocation12 + $0x50] sm:$0xff] %v1066
      %1104 = vst [vmem:[#allocation12 + $0x58] sm:$0xff] %v1071
      %1105 = vst [vmem:[#allocation12 + $0x60] sm:$0xff] %v1076
      %1106 = vst [vmem:[#allocation12 + $0x68] sm:$0xff] %v1081
      %1107 = vst [vmem:[#allocation12 + $0x70] sm:$0xff] %v1086
      %1108 = vst [vmem:[#allocation12 + $0x78] sm:$0xff] %v1091
    $region33: #{tpu_custom_call.1} parent=1 // pred_fallthru
      _
    // Predicated region
    $region34: #{tpu_custom_call.1} parent=1 // pred_check
      _
    $region35: #{tpu_custom_call.1} parent=1 // pred_check_branch
      %1110 = sbr.rel (0) target = $region37
    $region36: #{tpu_custom_call.1} parent=1 // pred_region
      %1112 = vsyncadd [#allocation7], 0
      %s1113 = sshll.u32 [#allocation11], 4
      %s1114 = int_to_ptr.vmem [resolvable:$true] %s1113
      %s1115 = sshll.u32 %s3, 4
      %s1116 = int_to_ptr.hbm [resolvable:$true] %s1115
      %1121 = dma.vmem_to_hbm [thread:$0]  %s1114, 2048, %s1116, [#allocation7], 128, 128, 8
    $region37: #{tpu_custom_call.1} parent=1 // pred_fallthru
      _
    // Predicated region
    $region38: #{tpu_custom_call.1} parent=1 // pred_check
      _
    $region39: #{tpu_custom_call.1} parent=1 // pred_check_branch
      %1123 = sbr.rel (0) target = $region41
    $region40: #{tpu_custom_call.1} parent=1 // pred_region
      %1125 = vsyncadd [#allocation13], 0
      %s1126 = sshll.u32 [#allocation12], 4
      %s1127 = int_to_ptr.vmem [resolvable:$true] %s1126
      %s1128 = sshll.u32 %s4, 4
      %s1129 = int_to_ptr.hbm [resolvable:$true] %s1128
      %1134 = dma.vmem_to_hbm [thread:$0]  %s1127, 2048, %s1129, [#allocation13], 128, 128, 8
    $region41: #{tpu_custom_call.1} parent=1 // pred_fallthru
      _
    // Predicated region
    $region42: #{tpu_custom_call.1} parent=1 // pred_check
      _
    $region43: #{tpu_custom_call.1} parent=1 // pred_check_branch
      %1136 = sbr.rel (0) target = $region45
    $region44: #{tpu_custom_call.1} parent=1 // pred_region
      %1138 = dma.done [#allocation7], 2048
    $region45: #{tpu_custom_call.1} parent=1 // pred_fallthru
      _
    // Predicated region
    $region46: #{tpu_custom_call.1} parent=1 // pred_check
      _
    $region47: #{tpu_custom_call.1} parent=1 // pred_check_branch
      %1140 = sbr.rel (0) target = $region49
    $region48: #{tpu_custom_call.1} parent=1 // pred_region
      %1142 = dma.done [#allocation13], 2048
    $region49: #{tpu_custom_call.1} parent=1 // pred_fallthru
      _
    %1143 = vsyncpa [#allocation6], 1
    %1144 = vsyncpa [#allocation9], 1
    %1145 = vsyncpa [#allocation7], 1
    %1146 = vsyncpa [#allocation13], 1

</llo_original>
